<compile_context>
chip_gen: v7x
topology: tpu7x:2x2x1
jax: 0.10.0
libtpu: 0.0.40
codegen_flags: <defaults>
</compile_context>

<pallas_src>
import functools

import jax
import jax.numpy as jnp
from jax.experimental import pallas as pl
from jax.experimental.pallas import tpu as pltpu


# ----------------------------- kernel ---------------------------------------


def _wce_kernel(logits_ref, tgt_ref, wt_ref, num_ref, den_ref, *, n_rows, tile_n):
    core = pl.program_id(0)            # "parallel" batch split (v7x: one per TC)
    t = pl.program_id(1)               # "arbitrary" reduction over tiles
    tiles_per_core = pl.num_programs(1)

    # Output blocks double as per-core accumulators (resident across t).
    @pl.when(t == 0)
    def _init():
        num_ref[...] = jnp.zeros_like(num_ref)
        den_ref[...] = jnp.zeros_like(den_ref)

    x = logits_ref[...]                # (tile_n, C), native dtype (f32 or bf16)
    tgt = tgt_ref[...]                 # (tile_n, 1) int32
    wt = wt_ref[...]                   # (tile_n, 1) f32 = w[t_i]
    n_classes = x.shape[-1]

    # Row-validity mask: handles the ragged tail of the last real tile and any
    # duplicate (clamped) tile introduced by the core split.  Mask via where,
    # NOT multiply-by-0, so NaN/Inf in garbage rows cannot leak through.
    logical_tile = core * tiles_per_core + t
    row0 = logical_tile * tile_n
    row_ids = row0 + jax.lax.broadcasted_iota(jnp.int32, (tile_n, 1), 0)
    valid = row_ids < n_rows

    # max and target-pick are exact in the input dtype (keeps bf16 packed on
    # v6e/v7x); the shifted exp-sum / lse path runs in f32.
    m = jnp.max(x, axis=-1, keepdims=True)                                   # (tile_n, 1)
    cls_row = jax.lax.broadcasted_iota(jnp.int32, (1, n_classes), 1)         # (1, C) lane iota
    onehot = cls_row == tgt                                                  # (tile_n, C)
    picked = jnp.sum(jnp.where(onehot, x, jnp.zeros((), x.dtype)),
                     axis=-1, keepdims=True)                                 # (tile_n, 1)

    xf = x.astype(jnp.float32)
    mf = m.astype(jnp.float32)
    sumexp = jnp.sum(jnp.exp(xf - mf), axis=-1, keepdims=True)               # (tile_n, 1)
    lse = jnp.log(sumexp) + mf
    nll = lse - picked.astype(jnp.float32)                                   # (tile_n, 1)

    num_ref[...] += jnp.where(valid, wt * nll, 0.0)
    den_ref[...] += jnp.where(valid, wt, 0.0)


# ----------------------------- wrapper ---------------------------------------


def _cdiv(a, b):
    return -(-a // b)


def _round_up(x, m):
    return ((x + m - 1) // m) * m


def _vmem_capacity_bytes():
    try:
        info = pltpu.get_tpu_info()
        cap = getattr(info, "vmem_capacity_bytes", None)
        if cap:
            return int(cap)
    except Exception:
        pass
    return 64 * 1024 * 1024  # conservative fallback (v7x physical VMEM)


def _choose_tile_n(n, c, itemsize, vmem_cap):
    # dtype-aware sublane multiple: 8 for 4B, 16 for bf16, 32 for int8/fp8.
    mult = max(8, 32 // max(1, itemsize))
    # Per-row VMEM cost:
    #   logits:  2 double-buffered (tile, C) tiles
    #   tgt+wt:  2 inputs x 2 buffers, (tile, 1) blocks lane-padded to 128 x 4B
    #   num+den: 2 output accumulators, lane-padded, assume 2 buffers each
    per_row = 2 * c * itemsize + (2 * 2 + 2 * 2) * 128 * 4
    rows = (vmem_cap // 2) // per_row                              # ~half of VMEM
    rows = min(rows, (8 * 1024 * 1024) // max(1, c * itemsize))    # <=8 MiB / logits buffer
    rows = min(rows, 8192)                                         # sanity cap
    rows = max(rows, mult)
    rows = (rows // mult) * mult
    rows = min(rows, _round_up(n, mult))
    return int(max(rows, mult))


def weighted_cross_entropy_loss(logits, targets, class_weights, tile_n=None):
    """logits: (N, C) f32/bf16, targets: (N,) int, class_weights: (C,) float -> scalar f32."""
    n, c = logits.shape
    targets = targets.astype(jnp.int32)
    w = class_weights.astype(jnp.float32)

    # Per-sample weight gathered in the wrapper (O(N)); kernel never sees the (C,) weights.
    wt = w[targets].reshape(n, 1)
    tgt2d = targets.reshape(n, 1)

    itemsize = jnp.dtype(logits.dtype).itemsize
    vmem_cap = _vmem_capacity_bytes()
    if tile_n is None:
        tile_n = _choose_tile_n(n, c, itemsize, vmem_cap)
    tile_n = int(tile_n)

    num_tiles = _cdiv(n, tile_n)
    # Megacore split: 2 on v7x-style chips (leading axis "parallel"); harmless on 1-TC chips.
    num_splits = 2 if num_tiles >= 2 else 1
    tiles_per_split = _cdiv(num_tiles, num_splits)
    last_block = num_tiles - 1

    def in_map(cs, t):
        # Clamp duplicate tiles (when num_tiles % num_splits != 0) to a valid block;
        # their rows are fully masked in the kernel via the row-validity predicate.
        return (jnp.minimum(cs * tiles_per_split + t, last_block), 0)

    out_map = lambda cs, t: (cs, 0)   # per-core accumulator block, resident across t

    grid_spec = pltpu.PrefetchScalarGridSpec(
        num_scalar_prefetch=0,
        grid=(num_splits, tiles_per_split),
        in_specs=[
            pl.BlockSpec((tile_n, c), in_map),   # logits tile
            pl.BlockSpec((tile_n, 1), in_map),   # targets tile
            pl.BlockSpec((tile_n, 1), in_map),   # per-sample weights tile
        ],
        out_specs=[
            pl.BlockSpec((tile_n, 1), out_map),  # per-core partial numerator
            pl.BlockSpec((tile_n, 1), out_map),  # per-core partial denominator
        ],
    )

    # VMEM budget: double-buffered logits tiles + lane-padded side/accumulator
    # buffers + slack, with 25% headroom, clamped to 75% of this generation's VMEM.
    logits_buf = tile_n * c * itemsize
    padded_buf = tile_n * 128 * 4
    est = 2 * logits_buf + (2 * 2 + 2 * 2) * padded_buf + (2 << 20)
    vmem_limit = int(min(max(16 << 20, est * 5 // 4), (vmem_cap * 3) // 4))

    kernel = functools.partial(_wce_kernel, n_rows=n, tile_n=tile_n)
    num_p, den_p = pl.pallas_call(
        kernel,
        out_shape=(
            jax.ShapeDtypeStruct((num_splits * tile_n, 1), jnp.float32),
            jax.ShapeDtypeStruct((num_splits * tile_n, 1), jnp.float32),
        ),
        grid_spec=grid_spec,
        compiler_params=pltpu.CompilerParams(
            dimension_semantics=("parallel", "arbitrary"),
            vmem_limit_bytes=vmem_limit,
        ),
    )(logits, tgt2d, wt)

    num = jnp.sum(num_p)
    den = jnp.sum(den_p)
    # If sum of weights is 0 this is 0/0 = NaN, matching torch's behavior.
    return num / den


# ----------------------------- reference & test ------------------------------


def _reference(logits, targets, class_weights):
    logits = logits.astype(jnp.float32)
    logp = jax.nn.log_softmax(logits, axis=-1)
    picked = jnp.take_along_axis(logp, targets[:, None], axis=-1)[:, 0]
    w = class_weights.astype(jnp.float32)[targets]
    return jnp.sum(-w * picked) / jnp.sum(w)


if __name__ == "__main__":
    key = jax.random.PRNGKey(0)
    # Small shapes consistent with the module: a batch of logits over 4 classes.
    # N=30 with tile_n=8 exercises the ragged tail (30 % 8 != 0), multi-tile
    # accumulation, and the 2-way core split (grid (2, 2)).
    N, C = 30, 4

    k_logits, k_targets = jax.random.split(key)
    logits = jax.random.normal(k_logits, (N, C), dtype=jnp.float32)
    targets = jax.random.randint(k_targets, (N,), 0, C, dtype=jnp.int32)

    # Deterministic class weights, as the module builds from its dict
    # {0: 1.0, 1: 2.0, 2: 0.5, 3: 1.5} sorted by key.
    class_weights = jnp.array([1.0, 2.0, 0.5, 1.5], dtype=jnp.float32)

    ref = _reference(logits, targets, class_weights)

    # Explicit small tile: multi-tile, ragged tail, dual-core split.
    loss = weighted_cross_entropy_loss(logits, targets, class_weights, tile_n=8)
    jax.block_until_ready(loss)
    assert jnp.allclose(loss, ref, atol=1e-5, rtol=1e-5), (loss, ref)

    # Auto tile size: single partial tile, no core split.
    loss2 = weighted_cross_entropy_loss(logits, targets, class_weights)
    jax.block_until_ready(loss2)
    assert jnp.allclose(loss2, ref, atol=1e-5, rtol=1e-5), (loss2, ref)

    print("KERNEL_OK")
</pallas_src>

<mosaic_0001>
module attributes {stable_mosaic.version = 11 : i64} {
  func.func @_wce_kernel(%arg0: i32, %arg1: i32, %arg2: memref<8x4xf32, #tpu.memory_space<vmem>>, %arg3: memref<8x1xi32, #tpu.memory_space<vmem>>, %arg4: memref<8x1xf32, #tpu.memory_space<vmem>>, %arg5: memref<8x1xf32, #tpu.memory_space<vmem>>, %arg6: memref<8x1xf32, #tpu.memory_space<vmem>>) attributes {dimension_semantics = [#tpu.dimension_semantics<parallel>, #tpu.dimension_semantics<arbitrary>], iteration_bounds = array<i64: 2, 2>, scalar_prefetch = 0 : i64, scratch_operands = 0 : i64, tpu.core_type = #tpu.core_type<tc>, window_params = [{transform_indices = @transform_0, window_bounds = array<i64: 8, 4>}, {transform_indices = @transform_1, window_bounds = array<i64: 8, 1>}, {transform_indices = @transform_2, window_bounds = array<i64: 8, 1>}, {transform_indices = @transform_3, window_bounds = array<i64: 8, 1>}, {transform_indices = @transform_4, window_bounds = array<i64: 8, 1>}]} {
    %c0_i32 = arith.constant 0 : i32
    %0 = arith.cmpi eq, %arg1, %c0_i32 : i32
    %1 = arith.extui %0 : i1 to i32
    %c0_i32_0 = arith.constant 0 : i32
    %2 = arith.cmpi ne, %1, %c0_i32_0 : i32
    scf.if %2 {
      %cst_19 = arith.constant 0.000000e+00 : f32
      %43 = vector.broadcast %cst_19 : f32 to vector<8x1xf32>
      %c0_20 = arith.constant 0 : index
      %c0_21 = arith.constant 0 : index
      %44 = vector.load %arg5[%c0_20, %c0_21] : memref<8x1xf32, #tpu.memory_space<vmem>>, vector<8x1xf32>
      tpu.vector_store %arg5[%c0_20, %c0_21], %43 {strides = array<i32>} : memref<8x1xf32, #tpu.memory_space<vmem>>, vector<8x1xf32>,
      %cst_22 = arith.constant 0.000000e+00 : f32
      %45 = vector.broadcast %cst_22 : f32 to vector<8x1xf32>
      %c0_23 = arith.constant 0 : index
      %c0_24 = arith.constant 0 : index
      %46 = vector.load %arg6[%c0_23, %c0_24] : memref<8x1xf32, #tpu.memory_space<vmem>>, vector<8x1xf32>
      tpu.vector_store %arg6[%c0_23, %c0_24], %45 {strides = array<i32>} : memref<8x1xf32, #tpu.memory_space<vmem>>, vector<8x1xf32>,
    } else {
    }
    %c0 = arith.constant 0 : index
    %c0_1 = arith.constant 0 : index
    %3 = vector.load %arg2[%c0, %c0_1] : memref<8x4xf32, #tpu.memory_space<vmem>>, vector<8x4xf32>
    %c0_2 = arith.constant 0 : index
    %c0_3 = arith.constant 0 : index
    %4 = vector.load %arg3[%c0_2, %c0_3] : memref<8x1xi32, #tpu.memory_space<vmem>>, vector<8x1xi32>
    %c0_4 = arith.constant 0 : index
    %c0_5 = arith.constant 0 : index
    %5 = vector.load %arg4[%c0_4, %c0_5] : memref<8x1xf32, #tpu.memory_space<vmem>>, vector<8x1xf32>
    %c2_i32 = arith.constant 2 : i32
    %6 = arith.muli %arg0, %c2_i32 : i32
    %7 = arith.addi %6, %arg1 : i32
    %c8_i32 = arith.constant 8 : i32
    %8 = arith.muli %7, %c8_i32 : i32
    %9 = tpu.iota {dimensions = array<i32: 0>} : vector<8x1xi32>
    %10 = vector.broadcast %8 : i32 to vector<8x1xi32>
    %11 = arith.addi %10, %9 : vector<8x1xi32>
    %c30_i32 = arith.constant 30 : i32
    %12 = vector.broadcast %c30_i32 : i32 to vector<8x1xi32>
    %13 = arith.cmpi slt, %11, %12 : vector<8x1xi32>
    %cst = arith.constant dense<0xFF800000> : vector<8xf32>
    %14 = vector.multi_reduction <maximumf>, %3, %cst [1] : vector<8x4xf32> to vector<8xf32>
    %15 = vector.shape_cast %14 : vector<8xf32> to vector<8x1xf32>
    %16 = tpu.iota {dimensions = array<i32: 1>} : vector<1x4xi32>
    %17 = vector.broadcast %16 : vector<1x4xi32> to vector<8x4xi32>
    %18 = vector.broadcast %4 : vector<8x1xi32> to vector<8x4xi32>
    %19 = arith.cmpi eq, %17, %18 : vector<8x4xi32>
    %cst_6 = arith.constant 0.000000e+00 : f32
    %20 = vector.broadcast %cst_6 : f32 to vector<8x4xf32>
    %21 = arith.select %19, %3, %20 : vector<8x4xi1>, vector<8x4xf32>
    %cst_7 = arith.constant dense<0.000000e+00> : vector<8xf32>
    %22 = vector.multi_reduction <add>, %21, %cst_7 [1] : vector<8x4xf32> to vector<8xf32>
    %23 = vector.shape_cast %22 : vector<8xf32> to vector<8x1xf32>
    %24 = vector.broadcast %15 : vector<8x1xf32> to vector<8x4xf32>
    %25 = arith.subf %3, %24 : vector<8x4xf32>
    %26 = math.exp %25 : vector<8x4xf32>
    %cst_8 = arith.constant dense<0.000000e+00> : vector<8xf32>
    %27 = vector.multi_reduction <add>, %26, %cst_8 [1] : vector<8x4xf32> to vector<8xf32>
    %28 = vector.shape_cast %27 : vector<8xf32> to vector<8x1xf32>
    %29 = math.log %28 : vector<8x1xf32>
    %30 = arith.addf %29, %15 : vector<8x1xf32>
    %31 = arith.subf %30, %23 : vector<8x1xf32>
    %c0_9 = arith.constant 0 : index
    %c0_10 = arith.constant 0 : index
    %32 = vector.load %arg5[%c0_9, %c0_10] : memref<8x1xf32, #tpu.memory_space<vmem>>, vector<8x1xf32>
    %33 = arith.mulf %5, %31 : vector<8x1xf32>
    %cst_11 = arith.constant 0.000000e+00 : f32
    %34 = vector.broadcast %cst_11 : f32 to vector<8x1xf32>
    %35 = arith.select %13, %33, %34 : vector<8x1xi1>, vector<8x1xf32>
    %36 = arith.addf %32, %35 : vector<8x1xf32>
    %c0_12 = arith.constant 0 : index
    %c0_13 = arith.constant 0 : index
    %37 = vector.load %arg5[%c0_12, %c0_13] : memref<8x1xf32, #tpu.memory_space<vmem>>, vector<8x1xf32>
    tpu.vector_store %arg5[%c0_12, %c0_13], %36 {strides = array<i32>} : memref<8x1xf32, #tpu.memory_space<vmem>>, vector<8x1xf32>,
    %c0_14 = arith.constant 0 : index
    %c0_15 = arith.constant 0 : index
    %38 = vector.load %arg6[%c0_14, %c0_15] : memref<8x1xf32, #tpu.memory_space<vmem>>, vector<8x1xf32>
    %cst_16 = arith.constant 0.000000e+00 : f32
    %39 = vector.broadcast %cst_16 : f32 to vector<8x1xf32>
    %40 = arith.select %13, %5, %39 : vector<8x1xi1>, vector<8x1xf32>
    %41 = arith.addf %38, %40 : vector<8x1xf32>
    %c0_17 = arith.constant 0 : index
    %c0_18 = arith.constant 0 : index
    %42 = vector.load %arg6[%c0_17, %c0_18] : memref<8x1xf32, #tpu.memory_space<vmem>>, vector<8x1xf32>
    tpu.vector_store %arg6[%c0_17, %c0_18], %41 {strides = array<i32>} : memref<8x1xf32, #tpu.memory_space<vmem>>, vector<8x1xf32>,
    return
  }
  func.func @transform_0(%arg0: i32, %arg1: i32) -> (i32, i32) {
    %c2_i32 = arith.constant 2 : i32
    %0 = arith.muli %arg0, %c2_i32 : i32
    %1 = arith.addi %0, %arg1 : i32
    %c3_i32 = arith.constant 3 : i32
    %2 = arith.minsi %1, %c3_i32 : i32
    %c0_i32 = arith.constant 0 : i32
    %c0_i32_0 = arith.constant 0 : i32
    return %2, %c0_i32 : i32, i32
  }
  func.func @transform_1(%arg0: i32, %arg1: i32) -> (i32, i32) {
    %c2_i32 = arith.constant 2 : i32
    %0 = arith.muli %arg0, %c2_i32 : i32
    %1 = arith.addi %0, %arg1 : i32
    %c3_i32 = arith.constant 3 : i32
    %2 = arith.minsi %1, %c3_i32 : i32
    %c0_i32 = arith.constant 0 : i32
    %c0_i32_0 = arith.constant 0 : i32
    return %2, %c0_i32 : i32, i32
  }
  func.func @transform_2(%arg0: i32, %arg1: i32) -> (i32, i32) {
    %c2_i32 = arith.constant 2 : i32
    %0 = arith.muli %arg0, %c2_i32 : i32
    %1 = arith.addi %0, %arg1 : i32
    %c3_i32 = arith.constant 3 : i32
    %2 = arith.minsi %1, %c3_i32 : i32
    %c0_i32 = arith.constant 0 : i32
    %c0_i32_0 = arith.constant 0 : i32
    return %2, %c0_i32 : i32, i32
  }
  func.func @transform_3(%arg0: i32, %arg1: i32) -> (i32, i32) {
    %c0_i32 = arith.constant 0 : i32
    %c0_i32_0 = arith.constant 0 : i32
    return %arg0, %c0_i32 : i32, i32
  }
  func.func @transform_4(%arg0: i32, %arg1: i32) -> (i32, i32) {
    %c0_i32 = arith.constant 0 : i32
    %c0_i32_0 = arith.constant 0 : i32
    return %arg0, %c0_i32 : i32, i32
  }
}

</mosaic_0001>

<llo_original>
// kernel: tpu_custom_call.1
$region0: #{tpu_custom_call.1}
  #allocation0 [shape = 'u32[]', space=smem, size = 0x4, offset = 0x4, fixed_abs, tag = 'smem constant byte address 0x4 - core index']
  #allocation1 [shape = 'u32[144,128]{1,0:T(1,128)}', space=vmem, size = 0x12000, scoped, tag = 'internal scratch']
  %s0 = inlined_call_operand.vmem [shape: f32[30,4], index: 0, kind: input, shape index: {}]
  %s1 = inlined_call_operand.vmem [shape: s32[30,1], index: 1, kind: input, shape index: {}]
  %s2 = inlined_call_operand.vmem [shape: f32[30,1], index: 2, kind: input, shape index: {}]
  %s3 = inlined_call_operand.vmem [shape: f32[16,1], index: 3, kind: output, shape index: {0}]
  %s4 = inlined_call_operand.vmem [shape: f32[16,1], index: 4, kind: output, shape index: {1}]
  %5 = xla_tuple %s3, %s4
  %s6 = sld [smem:[#allocation0]]
  $region57: #{tpu_custom_call.1} parent=0
    _
  %s8 = ssub.s32 1, %s6
  %s9 = scalar_select 0, %s8, %s6
  loop: start=0, step=1, limit=6
  $region2: #{tpu_custom_call.1} parent=0 // loop_pre_header
    _
  $region3: #{tpu_custom_call.1} parent=0 // loop_header
    %s11 = sphi 0, %s15
    %p12 = scmp.ge.s32.totalorder %s11, 6
    %s18 = sphi 0, %s30
    %s19 = sphi 0, %s26
    %s20 = sphi 0, %s18
    %s21 = sphi 0, %s19
    %s22 = sphi 0, %s20
    %s23 = sphi 0, %s21
    %s41 = sphi 0, %s43
    %s44 = sphi 0, %s41
    %s45 = sphi 0, %s44
    %s61 = sphi 0, %s45
    %s75 = sphi 0, %s77
    %s78 = sphi 0, %s75
    %s79 = sphi 0, %s78
    %s95 = sphi 0, %s79
    %s109 = sphi 0, %s111
    %s112 = sphi 0, %s109
    %s113 = sphi 0, %s112
    %s129 = sphi 0, %s113
    %s135 = sphi 0, %s137
    %s138 = sphi 0, %s135
    %s139 = sphi 0, %s138
    %s155 = sphi 0, %s139
    %s161 = sphi 0, %s163
    %s164 = sphi 0, %s161
    %s165 = sphi 0, %s164
    %s181 = sphi 0, %s165
  $region4: #{tpu_custom_call.1} parent=0 // loop_header_branch
    %14 = sbr.rel (%p12) target = $region8
  $region5: #{tpu_custom_call.1} parent=0 // loop_body
    %s16 = ssub.s32 %s11, 1
    %s17 = ssub.s32 %s11, 2
    %s24 = sadd.s32 1, %s19
    %p25 = scmp.ge.s32.totalorder %s24, 2
    %s26 = scalar_select %p25, 0, %s24
    %s27 = sadd.s32 1, %s18
    %s28 = scalar_select %p25, %s27, %s18
    %p29 = scmp.ge.s32.totalorder %s28, 2
    %s30 = scalar_select %p29, 0, %s28
    %s31 = smul.u32 %s18, 2
    %s32 = sadd.s32 %s31, %s19
    %p33 = scmp.lt.s32.totalorder %s32, 3
    %s34 = scalar_select %p33, %s32, 3
    %s35 = smul.u32 %s30, 2
    %s36 = sadd.s32 %s35, %s26
    %p37 = scmp.lt.s32.totalorder %s36, 3
    %s38 = scalar_select %p37, %s36, 3
    %s39 = ssub.s32 %s34, %s38
    %p40 = scmp.eq.s32.totalorder %s39, 0
    %s42 = sadd.s32 %s41, 1
    %s43 = scalar_select %p40, %s41, %s42
    %p46 = pneg %p40
    %p47 = scmp.eq.s32.totalorder %s11, 3
    %p48 = por %p46, %p47
    %p49 = scmp.ne.s32.totalorder %s41, %s44
    %p50 = scmp.eq.s32.totalorder %s11, 0
    %p51 = por %p49, %p50
    %p52 = scmp.ne.s32.totalorder %s41, %s44
    %p53 = scmp.eq.s32.totalorder %s16, 3
    %p54 = por %p52, %p53
    %p55 = scmp.ne.s32.totalorder %s44, %s45
    %p56 = scmp.eq.s32.totalorder %s16, 0
    %p57 = por %p55, %p56
    %p58 = scmp.ne.s32.totalorder %s44, %s45
    %p59 = scmp.eq.s32.totalorder %s17, 3
    %p60 = por %p58, %p59
    %p62 = scmp.ne.s32.totalorder %s45, %s61
    %p63 = scmp.eq.s32.totalorder %s17, 0
    %p64 = por %p62, %p63
    %s65 = smul.u32 %s18, 2
    %s66 = sadd.s32 %s65, %s19
    %p67 = scmp.lt.s32.totalorder %s66, 3
    %s68 = scalar_select %p67, %s66, 3
    %s69 = smul.u32 %s30, 2
    %s70 = sadd.s32 %s69, %s26
    %p71 = scmp.lt.s32.totalorder %s70, 3
    %s72 = scalar_select %p71, %s70, 3
    %s73 = ssub.s32 %s68, %s72
    %p74 = scmp.eq.s32.totalorder %s73, 0
    %s76 = sadd.s32 %s75, 1
    %s77 = scalar_select %p74, %s75, %s76
    %p80 = pneg %p74
    %p81 = scmp.eq.s32.totalorder %s11, 3
    %p82 = por %p80, %p81
    %p83 = scmp.ne.s32.totalorder %s75, %s78
    %p84 = scmp.eq.s32.totalorder %s11, 0
    %p85 = por %p83, %p84
    %p86 = scmp.ne.s32.totalorder %s75, %s78
    %p87 = scmp.eq.s32.totalorder %s16, 3
    %p88 = por %p86, %p87
    %p89 = scmp.ne.s32.totalorder %s78, %s79
    %p90 = scmp.eq.s32.totalorder %s16, 0
    %p91 = por %p89, %p90
    %p92 = scmp.ne.s32.totalorder %s78, %s79
    %p93 = scmp.eq.s32.totalorder %s17, 3
    %p94 = por %p92, %p93
    %p96 = scmp.ne.s32.totalorder %s79, %s95
    %p97 = scmp.eq.s32.totalorder %s17, 0
    %p98 = por %p96, %p97
    %s99 = smul.u32 %s18, 2
    %s100 = sadd.s32 %s99, %s19
    %p101 = scmp.lt.s32.totalorder %s100, 3
    %s102 = scalar_select %p101, %s100, 3
    %s103 = smul.u32 %s30, 2
    %s104 = sadd.s32 %s103, %s26
    %p105 = scmp.lt.s32.totalorder %s104, 3
    %s106 = scalar_select %p105, %s104, 3
    %s107 = ssub.s32 %s102, %s106
    %p108 = scmp.eq.s32.totalorder %s107, 0
    %s110 = sadd.s32 %s109, 1
    %s111 = scalar_select %p108, %s109, %s110
    %p114 = pneg %p108
    %p115 = scmp.eq.s32.totalorder %s11, 3
    %p116 = por %p114, %p115
    %p117 = scmp.ne.s32.totalorder %s109, %s112
    %p118 = scmp.eq.s32.totalorder %s11, 0
    %p119 = por %p117, %p118
    %p120 = scmp.ne.s32.totalorder %s109, %s112
    %p121 = scmp.eq.s32.totalorder %s16, 3
    %p122 = por %p120, %p121
    %p123 = scmp.ne.s32.totalorder %s112, %s113
    %p124 = scmp.eq.s32.totalorder %s16, 0
    %p125 = por %p123, %p124
    %p126 = scmp.ne.s32.totalorder %s112, %s113
    %p127 = scmp.eq.s32.totalorder %s17, 3
    %p128 = por %p126, %p127
    %p130 = scmp.ne.s32.totalorder %s113, %s129
    %p131 = scmp.eq.s32.totalorder %s17, 0
    %p132 = por %p130, %p131
    %s133 = ssub.s32 %s18, %s30
    %p134 = scmp.eq.s32.totalorder %s133, 0
    %s136 = sadd.s32 %s135, 1
    %s137 = scalar_select %p134, %s135, %s136
    %p140 = pneg %p134
    %p141 = scmp.eq.s32.totalorder %s11, 3
    %p142 = por %p140, %p141
    %p143 = scmp.ne.s32.totalorder %s135, %s138
    %p144 = scmp.eq.s32.totalorder %s11, 0
    %p145 = por %p143, %p144
    %p146 = scmp.ne.s32.totalorder %s135, %s138
    %p147 = scmp.eq.s32.totalorder %s16, 3
    %p148 = por %p146, %p147
    %p149 = scmp.ne.s32.totalorder %s138, %s139
    %p150 = scmp.eq.s32.totalorder %s16, 0
    %p151 = por %p149, %p150
    %p152 = scmp.ne.s32.totalorder %s138, %s139
    %p153 = scmp.eq.s32.totalorder %s17, 3
    %p154 = por %p152, %p153
    %p156 = scmp.ne.s32.totalorder %s139, %s155
    %p157 = scmp.eq.s32.totalorder %s17, 0
    %p158 = por %p156, %p157
    %s159 = ssub.s32 %s18, %s30
    %p160 = scmp.eq.s32.totalorder %s159, 0
    %s162 = sadd.s32 %s161, 1
    %s163 = scalar_select %p160, %s161, %s162
    %p166 = pneg %p160
    %p167 = scmp.eq.s32.totalorder %s11, 3
    %p168 = por %p166, %p167
    %p169 = scmp.ne.s32.totalorder %s161, %s164
    %p170 = scmp.eq.s32.totalorder %s11, 0
    %p171 = por %p169, %p170
    %p172 = scmp.ne.s32.totalorder %s161, %s164
    %p173 = scmp.eq.s32.totalorder %s16, 3
    %p174 = por %p172, %p173
    %p175 = scmp.ne.s32.totalorder %s164, %s165
    %p176 = scmp.eq.s32.totalorder %s16, 0
    %p177 = por %p175, %p176
    %p178 = scmp.ne.s32.totalorder %s164, %s165
    %p179 = scmp.eq.s32.totalorder %s17, 3
    %p180 = por %p178, %p179
    %p182 = scmp.ne.s32.totalorder %s165, %s181
    %p183 = scmp.eq.s32.totalorder %s17, 0
    %p184 = por %p182, %p183
    %p185 = scmp.le.s32.totalorder 1, %s11
    %p186 = scmp.lt.s32.totalorder %s11, 5
    %p187 = pnand %p185, %p186
    %p188 = pneg %p187
    // Predicated region
    $region9: #{tpu_custom_call.1} parent=5 // pred_check
      _
    $region10: #{tpu_custom_call.1} parent=5 // pred_check_branch
      %190 = sbr.rel (%p187) target = $region12
    $region11: #{tpu_custom_call.1} parent=5 // pred_region
      %s191 = ssub.s32 %s11, 1
    $region12: #{tpu_custom_call.1} parent=5 // pred_fallthru
      _
    %p192 = scmp.lt.s32.totalorder %s11, 4
    // Predicated region
    $region13: #{tpu_custom_call.1} parent=5 // pred_check
      %p193 = pneg %p192
    $region14: #{tpu_custom_call.1} parent=5 // pred_check_branch
      %195 = sbr.rel (%p193) target = $region16
    $region15: #{tpu_custom_call.1} parent=5 // pred_region
      // Predicated region
      $region17: #{tpu_custom_call.1} parent=15 // pred_check
        %p196 = pneg %p51
      $region18: #{tpu_custom_call.1} parent=15 // pred_check_branch
        %198 = sbr.rel (%p196) target = $region20
      $region19: #{tpu_custom_call.1} parent=15 // pred_region
        %s199 = smul.u32 %s18, 2
        %s200 = sadd.s32 %s199, %s19
        %p201 = scmp.lt.s32.totalorder %s200, 3
        %s202 = scalar_select %p201, %s200, 3
        %p203 = scmp.lt.s32.totalorder %s202, 3
        %s204 = scalar_select %p203, %s202, 3
        %s205 = smul.addr %s204, 8
        %s206 = scalar_lea.vmem %s0, %s205
        %s207 = smul.u32 %s18, 2
        %s208 = sadd.s32 %s207, %s19
        %p209 = scmp.lt.s32.totalorder %s208, 3
        %s210 = scalar_select %p209, %s208, 3
      $region20: #{tpu_custom_call.1} parent=15 // pred_fallthru
        _
      // Predicated region
      $region21: #{tpu_custom_call.1} parent=15 // pred_check
        %p211 = pneg %p85
      $region22: #{tpu_custom_call.1} parent=15 // pred_check_branch
        %213 = sbr.rel (%p211) target = $region24
      $region23: #{tpu_custom_call.1} parent=15 // pred_region
        %s214 = smul.u32 %s18, 2
        %s215 = sadd.s32 %s214, %s19
        %p216 = scmp.lt.s32.totalorder %s215, 3
        %s217 = scalar_select %p216, %s215, 3
        %p218 = scmp.lt.s32.totalorder %s217, 3
        %s219 = scalar_select %p218, %s217, 3
        %s220 = smul.addr %s219, 8
        %s221 = scalar_lea.vmem %s1, %s220
        %s222 = smul.u32 %s18, 2
        %s223 = sadd.s32 %s222, %s19
        %p224 = scmp.lt.s32.totalorder %s223, 3
        %s225 = scalar_select %p224, %s223, 3
      $region24: #{tpu_custom_call.1} parent=15 // pred_fallthru
        _
      // Predicated region
      $region25: #{tpu_custom_call.1} parent=15 // pred_check
        %p226 = pneg %p119
      $region26: #{tpu_custom_call.1} parent=15 // pred_check_branch
        %228 = sbr.rel (%p226) target = $region28
      $region27: #{tpu_custom_call.1} parent=15 // pred_region
        %s229 = smul.u32 %s18, 2
        %s230 = sadd.s32 %s229, %s19
        %p231 = scmp.lt.s32.totalorder %s230, 3
        %s232 = scalar_select %p231, %s230, 3
        %p233 = scmp.lt.s32.totalorder %s232, 3
        %s234 = scalar_select %p233, %s232, 3
        %s235 = smul.addr %s234, 8
        %s236 = scalar_lea.vmem %s2, %s235
        %s237 = smul.u32 %s18, 2
        %s238 = sadd.s32 %s237, %s19
        %p239 = scmp.lt.s32.totalorder %s238, 3
        %s240 = scalar_select %p239, %s238, 3
      $region28: #{tpu_custom_call.1} parent=15 // pred_fallthru
        _
    $region16: #{tpu_custom_call.1} parent=5 // pred_fallthru
      _
    %p241 = scmp.le.s32.totalorder 1, %s11
    %p242 = scmp.lt.s32.totalorder %s11, 5
    %p243 = pnand %p241, %p242
    %p244 = pneg %p243
    // Predicated region
    $region29: #{tpu_custom_call.1} parent=5 // pred_check
      _
    $region30: #{tpu_custom_call.1} parent=5 // pred_check_branch
      %246 = sbr.rel (%p243) target = $region32
    $region31: #{tpu_custom_call.1} parent=5 // pred_region
      %s247 = ssub.s32 %s11, 1
      %s248 = smul.u32 %s20, 2
      %s249 = sadd.s32 %s248, %s21
      %p250 = scmp.lt.s32.totalorder %s249, 3
      %s251 = scalar_select %p250, %s249, 3
      %p252 = scmp.lt.s32.totalorder %s251, 3
      %s253 = scalar_select %p252, %s251, 3
      %s254 = smul.addr %s253, 8
      %s255 = scalar_lea.vmem %s0, %s254
      %p256 = pneg %p57
      %p257 = pneg %p54
      %s258 = smul.u32 %s20, 2
      %s259 = sadd.s32 %s258, %s21
      %p260 = scmp.lt.s32.totalorder %s259, 3
      %s261 = scalar_select %p260, %s259, 3
      %p262 = scmp.lt.s32.totalorder %s261, 3
      %s263 = scalar_select %p262, %s261, 3
      %s264 = smul.addr %s263, 8
      %s265 = scalar_lea.vmem %s1, %s264
      %p266 = pneg %p91
      %p267 = pneg %p88
      %s268 = smul.u32 %s20, 2
      %s269 = sadd.s32 %s268, %s21
      %p270 = scmp.lt.s32.totalorder %s269, 3
      %s271 = scalar_select %p270, %s269, 3
      %p272 = scmp.lt.s32.totalorder %s271, 3
      %s273 = scalar_select %p272, %s271, 3
      %s274 = smul.addr %s273, 8
      %s275 = scalar_lea.vmem %s2, %s274
      %p276 = pneg %p125
      %p277 = pneg %p122
      %p278 = pneg %p151
      %p279 = pneg %p148
      %p280 = scmp.lt.s32.totalorder %s20, 1
      %s281 = scalar_select %p280, %s20, 1
      %s282 = smul.addr %s281, 8
      %s283 = scalar_lea.vmem %s3, %s282
      %p284 = pneg %p177
      %p285 = pneg %p174
      %p286 = scmp.lt.s32.totalorder %s20, 1
      %s287 = scalar_select %p286, %s20, 1
      %s288 = smul.addr %s287, 8
      %s289 = scalar_lea.vmem %s4, %s288
      %s290 = smul.u32 %s20, 2
      %s291 = sadd.s32 %s290, %s21
      %p292 = scmp.lt.s32.totalorder %s291, 3
      %s293 = scalar_select %p292, %s291, 3
      %p294 = scmp.lt.s32.totalorder %s293, 3
      %s295 = scalar_select %p294, %s293, 3
      %s296 = smul.addr %s295, 8
      %s297 = scalar_lea.vmem %s0, %s296
      %s298 = smul.u32 %s20, 2
      %s299 = sadd.s32 %s298, %s21
      %p300 = scmp.lt.s32.totalorder %s299, 3
      %s301 = scalar_select %p300, %s299, 3
      %s302 = smul.u32 %s20, 2
      %s303 = sadd.s32 %s302, %s21
      %p304 = scmp.lt.s32.totalorder %s303, 3
      %s305 = scalar_select %p304, %s303, 3
      %p306 = scmp.lt.s32.totalorder %s305, 3
      %s307 = scalar_select %p306, %s305, 3
      %s308 = smul.addr %s307, 8
      %s309 = scalar_lea.vmem %s1, %s308
      %s310 = smul.u32 %s20, 2
      %s311 = sadd.s32 %s310, %s21
      %p312 = scmp.lt.s32.totalorder %s311, 3
      %s313 = scalar_select %p312, %s311, 3
      %s314 = smul.u32 %s20, 2
      %s315 = sadd.s32 %s314, %s21
      %p316 = scmp.lt.s32.totalorder %s315, 3
      %s317 = scalar_select %p316, %s315, 3
      %p318 = scmp.lt.s32.totalorder %s317, 3
      %s319 = scalar_select %p318, %s317, 3
      %s320 = smul.addr %s319, 8
      %s321 = scalar_lea.vmem %s2, %s320
      %s322 = smul.u32 %s20, 2
      %s323 = sadd.s32 %s322, %s21
      %p324 = scmp.lt.s32.totalorder %s323, 3
      %s325 = scalar_select %p324, %s323, 3
      %p326 = scmp.lt.s32.totalorder %s20, 1
      %s327 = scalar_select %p326, %s20, 1
      %s328 = smul.addr %s327, 8
      %s329 = scalar_lea.vmem %s3, %s328
      %p330 = scmp.lt.s32.totalorder %s20, 1
      %s331 = scalar_select %p330, %s20, 1
      %s332 = smul.addr %s331, 8
      %s333 = scalar_lea.vmem %s4, %s332
      %p334 = scmp.eq.s32.totalorder %s21, 0
      // Predicated region
      $region33: #{tpu_custom_call.1} parent=31 // pred_check
        %p335 = pneg %p334
      $region34: #{tpu_custom_call.1} parent=31 // pred_check_branch
        %337 = sbr.rel (%p335) target = $region36
      $region35: #{tpu_custom_call.1} parent=31 // pred_region
        %vm338 = vcmask 7168
        %339 = vst.msk [vmem:[%s329] sm:$0xff] %vm338, 0.0
        %340 = vst.msk [vmem:[%s333] sm:$0xff] %vm338, 0.0
      $region36: #{tpu_custom_call.1} parent=31 // pred_fallthru
        _
      %v341 = vld [vmem:[%s297] sm:$0xff]
      %v342 = vld [vmem:[%s309] sm:$0xff]
      %v343 = vld [vmem:[%s321] sm:$0xff]
      %s344 = smul.u32 %s20, 2
      %s345 = sadd.s32 %s344, %s21
      %s346 = smul.u32 %s345, 8
      %v347 = vlaneseq
      %v348 = vshrl.u32 %v347, 7
      %v349 = vstv %s346
      %v350 = vadd.s32 %v349, %v348
      %vm351 = vcmp.lt.s32.totalorder %v350, 30
      %vm352 = vcmask 31744
      %v353 = vsel %vm352, %v341, -inf
      %354 = vmax.xlane.f32.xlu0 %v353
      %v355 = vpop.xlane.xlu0 %354
      %v356 = vlaneseq
      %v357 = vand.u32 %v356, 127
      %358 = vset.pattern.permute.xlu0 0
      %359 = vperm.xlu0 %358, %v342
      %v360 = vpop.permute.xlu0 %359
      %vm361 = vcmp.eq.s32.totalorder %v357, %v360
      %v362 = vsel %vm361, %v341, 0.0
      %v363 = vsel %vm352, %v362, 0.0
      %364 = vadd.xlane.f32.xlu0 %v363
      %v365 = vpop.xlane.xlu0 %364
      %v366 = vsub.f32 %v341, %v355
      %v367 = vmul.f32 %v366, 1.442695
      %v368 = vpow.pop %v367
      %v369 = vsel %vm352, %v368, 0.0
      %370 = vadd.xlane.f32.xlu0 %v369
      %v371 = vpop.xlane.xlu0 %370
      %v372 = vlog2.pop %v371
      %v373 = vmul.f32 %v372, 0.6931472
      %v374 = vadd.f32 %v373, %v355
      %v375 = vsub.f32 %v374, %v365
      %v376 = vld [vmem:[%s329] sm:$0xff]
      %v377 = vmul.f32 %v343, %v375
      %v378 = vsel %vm351, %v377, 0.0
      %v379 = vadd.f32 %v376, %v378
      %vm380 = vcmask 7168
      %381 = vst.msk [vmem:[%s329] sm:$0xff] %vm380, %v379
      %v382 = vld [vmem:[%s333] sm:$0xff]
      %v383 = vsel %vm351, %v343, 0.0
      %v384 = vadd.f32 %v382, %v383
      %385 = vst.msk [vmem:[%s333] sm:$0xff] %vm380, %v384
      %p386 = scmp.lt.s32.totalorder %s20, 1
      %s387 = scalar_select %p386, %s20, 1
      %s388 = smul.addr %s387, 8
      %s389 = scalar_lea.vmem %s3, %s388
      %p390 = scmp.lt.s32.totalorder %s20, 1
      %s391 = scalar_select %p390, %s20, 1
      %s392 = smul.addr %s391, 8
      %s393 = scalar_lea.vmem %s4, %s392
      // Predicated region
      $region37: #{tpu_custom_call.1} parent=31 // pred_check
        %p394 = pneg %p148
      $region38: #{tpu_custom_call.1} parent=31 // pred_check_branch
        %396 = sbr.rel (%p394) target = $region40
      $region39: #{tpu_custom_call.1} parent=31 // pred_region
        _
      $region40: #{tpu_custom_call.1} parent=31 // pred_fallthru
        _
      // Predicated region
      $region41: #{tpu_custom_call.1} parent=31 // pred_check
        %p397 = pneg %p174
      $region42: #{tpu_custom_call.1} parent=31 // pred_check_branch
        %399 = sbr.rel (%p397) target = $region44
      $region43: #{tpu_custom_call.1} parent=31 // pred_region
        _
      $region44: #{tpu_custom_call.1} parent=31 // pred_fallthru
        _
    $region32: #{tpu_custom_call.1} parent=5 // pred_fallthru
      _
    %p400 = scmp.le.s32.totalorder 2, %s11
    // Predicated region
    $region45: #{tpu_custom_call.1} parent=5 // pred_check
      %p401 = pneg %p400
    $region46: #{tpu_custom_call.1} parent=5 // pred_check_branch
      %403 = sbr.rel (%p401) target = $region48
    $region47: #{tpu_custom_call.1} parent=5 // pred_region
      %s404 = ssub.s32 %s11, 2
      // Predicated region
      $region49: #{tpu_custom_call.1} parent=47 // pred_check
        %p405 = pneg %p154
      $region50: #{tpu_custom_call.1} parent=47 // pred_check_branch
        %407 = sbr.rel (%p405) target = $region52
      $region51: #{tpu_custom_call.1} parent=47 // pred_region
        %p408 = scmp.lt.s32.totalorder %s22, 1
        %s409 = scalar_select %p408, %s22, 1
        %s410 = smul.addr %s409, 8
        %s411 = scalar_lea.vmem %s3, %s410
      $region52: #{tpu_custom_call.1} parent=47 // pred_fallthru
        _
      // Predicated region
      $region53: #{tpu_custom_call.1} parent=47 // pred_check
        %p412 = pneg %p180
      $region54: #{tpu_custom_call.1} parent=47 // pred_check_branch
        %414 = sbr.rel (%p412) target = $region56
      $region55: #{tpu_custom_call.1} parent=47 // pred_region
        %p415 = scmp.lt.s32.totalorder %s22, 1
        %s416 = scalar_select %p415, %s22, 1
        %s417 = smul.addr %s416, 8
        %s418 = scalar_lea.vmem %s4, %s417
      $region56: #{tpu_custom_call.1} parent=47 // pred_fallthru
        _
    $region48: #{tpu_custom_call.1} parent=5 // pred_fallthru
      _
  $region6: #{tpu_custom_call.1} parent=0 // loop_footer
    %s15 = sadd.s32 1, %s11
  $region7: #{tpu_custom_call.1} parent=0 // loop_footer_branch
    %10 = sbr.rel target = $region3
  $region8: #{tpu_custom_call.1} parent=0 // loop_exit
    _

</llo_original>
